<compile_context>
chip_gen: v5e
topology: v5e:2x2
jax: 0.10.0
libtpu: 0.0.40
codegen_flags: <defaults>
</compile_context>

<pallas_src>
import jax
import jax.numpy as jnp
from jax.experimental import pallas as pl
from jax.experimental.pallas import tpu as pltpu

GAME_INPUT_C = 32
GAME_OUTPUT_C = 16

_MAX_TB = 2048            # batch tile for the streaming (large-B) regime
_SMALL_B_FASTPATH = 256   # below this, fused XLA dot+add beats any kernel launch


def prepare_linear_params(weight, bias):
    """One-time parameter setup (at init, NOT per forward call).

    weight: [C_out, C_in] (PyTorch nn.Linear convention); bias: [C_out].
    Returns (w_t [C_in, C_out], b2d [1, C_out]) -- pre-transposed, unpadded.
    """
    return jnp.asarray(weight).T, jnp.asarray(bias).reshape(1, -1)


def _linear_kernel(x_ref, w_ref, b_ref, o_ref):
    # x_ref: [tb, C_in]  w_ref: [C_in, C_out]  b_ref: [1, C_out]  o_ref: [tb, C_out]
    acc = jnp.dot(x_ref[...], w_ref[...], preferred_element_type=jnp.float32)
    o_ref[...] = (acc + b_ref[...]).astype(o_ref.dtype)


def linear_pallas(x, w_t, b2d, tb=None):
    """Pallas path: y = x @ w_t + b2d with only the batch axis tiled.

    No feature padding: in/out blocks whose last dim equals the full array dim
    are legal, and the ragged final batch block (grid via pl.cdiv) is masked
    by the Pallas pipeline on writeback.
    """
    b, c_in = x.shape
    c_out = w_t.shape[1]
    if tb is None:
        tb = b if b <= _MAX_TB else _MAX_TB
    grid = (pl.cdiv(b, tb),)
    return pl.pallas_call(
        _linear_kernel,
        out_shape=jax.ShapeDtypeStruct((b, c_out), x.dtype),
        grid=grid,
        in_specs=[
            pl.BlockSpec((tb, c_in), lambda i: (i, 0)),
            pl.BlockSpec((c_in, c_out), lambda i: (0, 0)),
            pl.BlockSpec((1, c_out), lambda i: (0, 0)),
        ],
        out_specs=pl.BlockSpec((tb, c_out), lambda i: (i, 0)),
        compiler_params=pltpu.CompilerParams(
            dimension_semantics=("parallel",)),
    )(x, w_t, b2d)


@jax.jit
def model_linear_forward(x, w_t, b2d):
    """Forward of Model_linear: y = x @ W^T + b.   x: [B, GAME_INPUT_C] f32."""
    b = x.shape[0]
    if b < _SMALL_B_FASTPATH:
        # Tiny-batch fast path: the problem is pure launch overhead; let XLA
        # emit a single fused dot+add.
        return x @ w_t + b2d
    return linear_pallas(x, w_t, b2d)


if __name__ == "__main__":
    key = jax.random.PRNGKey(0)
    kx, kw, kb = jax.random.split(key, 3)

    B = 2
    x = jax.random.normal(kx, (B, GAME_INPUT_C), dtype=jnp.float32)

    # Deterministic parameter init (PyTorch nn.Linear-style uniform bound).
    bound = 1.0 / (GAME_INPUT_C ** 0.5)
    weight = jax.random.uniform(
        kw, (GAME_OUTPUT_C, GAME_INPUT_C), minval=-bound, maxval=bound,
        dtype=jnp.float32)
    bias = jax.random.uniform(
        kb, (GAME_OUTPUT_C,), minval=-bound, maxval=bound, dtype=jnp.float32)

    # One-time parameter preparation (no per-call transpose).
    w_t, b2d = prepare_linear_params(weight, bias)

    # 1) Run the Pallas kernel directly at the small example shape.
    y_kernel = linear_pallas(x, w_t, b2d)
    jax.block_until_ready(y_kernel)

    # 2) Exercise the multi-step grid + ragged final block at small shapes.
    B2 = 40
    x2 = jax.random.normal(kx, (B2, GAME_INPUT_C), dtype=jnp.float32)
    y2 = linear_pallas(x2, w_t, b2d, tb=16)   # grid = 3, last block ragged
    jax.block_until_ready(y2)

    # 3) Dispatching wrapper (tiny-B fast path).
    y_wrap = model_linear_forward(x, w_t, b2d)
    jax.block_until_ready(y_wrap)

    # Correctness checks against plain JAX reference.
    y_ref = x @ weight.T + bias
    y2_ref = x2 @ weight.T + bias
    assert y_kernel.shape == (B, GAME_OUTPUT_C)
    assert jnp.allclose(y_kernel, y_ref, atol=1e-5, rtol=1e-5)
    assert jnp.allclose(y2, y2_ref, atol=1e-5, rtol=1e-5)
    assert jnp.allclose(y_wrap, y_ref, atol=1e-5, rtol=1e-5)

    print("KERNEL_OK")
</pallas_src>

<mosaic_0001>
module attributes {stable_mosaic.version = 11 : i64} {
  func.func @_linear_kernel(%arg0: i32, %arg1: memref<2x32xf32, #tpu.memory_space<vmem>>, %arg2: memref<32x16xf32, #tpu.memory_space<vmem>>, %arg3: memref<1x16xf32, #tpu.memory_space<vmem>>, %arg4: memref<2x16xf32, #tpu.memory_space<vmem>>) attributes {dimension_semantics = [#tpu.dimension_semantics<parallel>], iteration_bounds = array<i64: 1>, scalar_prefetch = 0 : i64, scratch_operands = 0 : i64, tpu.core_type = #tpu.core_type<tc>, window_params = [{transform_indices = @transform_0, window_bounds = array<i64: 2, 32>}, {pipeline_mode = #tpu.pipeline_mode<synchronous>, transform_indices = @transform_1, window_bounds = array<i64: 32, 16>}, {pipeline_mode = #tpu.pipeline_mode<synchronous>, transform_indices = @transform_2, window_bounds = array<i64: 1, 16>}, {transform_indices = @transform_3, window_bounds = array<i64: 2, 16>}]} {
    %c0 = arith.constant 0 : index
    %c0_0 = arith.constant 0 : index
    %0 = vector.load %arg1[%c0, %c0_0] : memref<2x32xf32, #tpu.memory_space<vmem>>, vector<2x32xf32>
    %c0_1 = arith.constant 0 : index
    %c0_2 = arith.constant 0 : index
    %1 = vector.load %arg2[%c0_1, %c0_2] : memref<32x16xf32, #tpu.memory_space<vmem>>, vector<32x16xf32>
    %cst = arith.constant dense<0.000000e+00> : vector<2x16xf32>
    %2 = tpu.matmul %0, %1, %cst {dimension_numbers = #tpu.dot_dimension_numbers<[1], [0], [0], [1], [0, 0, 1, 1], [], []>} : vector<2x32xf32>, vector<32x16xf32>, vector<2x16xf32> -> vector<2x16xf32>
    %c0_3 = arith.constant 0 : index
    %c0_4 = arith.constant 0 : index
    %3 = vector.load %arg3[%c0_3, %c0_4] : memref<1x16xf32, #tpu.memory_space<vmem>>, vector<1x16xf32>
    %4 = vector.broadcast %3 : vector<1x16xf32> to vector<2x16xf32>
    %5 = arith.addf %2, %4 : vector<2x16xf32>
    %c0_5 = arith.constant 0 : index
    %c0_6 = arith.constant 0 : index
    %6 = vector.load %arg4[%c0_5, %c0_6] : memref<2x16xf32, #tpu.memory_space<vmem>>, vector<2x16xf32>
    tpu.vector_store %arg4[%c0_5, %c0_6], %5 {strides = array<i32>} : memref<2x16xf32, #tpu.memory_space<vmem>>, vector<2x16xf32>,
    return
  }
  func.func @transform_0(%arg0: i32) -> (i32, i32) {
    %c0_i32 = arith.constant 0 : i32
    %c0_i32_0 = arith.constant 0 : i32
    return %arg0, %c0_i32 : i32, i32
  }
  func.func @transform_1(%arg0: i32) -> (i32, i32) {
    %c0_i32 = arith.constant 0 : i32
    %c0_i32_0 = arith.constant 0 : i32
    %c0_i32_1 = arith.constant 0 : i32
    return %c0_i32, %c0_i32_0 : i32, i32
  }
  func.func @transform_2(%arg0: i32) -> (i32, i32) {
    %c0_i32 = arith.constant 0 : i32
    %c0_i32_0 = arith.constant 0 : i32
    %c0_i32_1 = arith.constant 0 : i32
    return %c0_i32, %c0_i32_0 : i32, i32
  }
  func.func @transform_3(%arg0: i32) -> (i32, i32) {
    %c0_i32 = arith.constant 0 : i32
    %c0_i32_0 = arith.constant 0 : i32
    return %arg0, %c0_i32 : i32, i32
  }
}

</mosaic_0001>

<llo_original>
// kernel: tpu_custom_call.1
$region0: #{tpu_custom_call.1}
  #allocation0 [shape = 'u32[]', space=smem, size = 0x4, offset = 0x4, fixed_abs, tag = 'smem constant byte address 0x4 - core index']
  #allocation1 [shape = 'u32[72,128]{1,0:T(1,128)}', space=vmem, size = 0x9000, scoped, tag = 'internal scratch']
  %s0 = inlined_call_operand.vmem [shape: f32[2,32], index: 0, kind: input, shape index: {}]
  %s1 = inlined_call_operand.vmem [shape: f32[32,16], index: 1, kind: input, shape index: {}]
  %s2 = inlined_call_operand.vmem [shape: f32[1,16], index: 2, kind: input, shape index: {}]
  %s3 = inlined_call_operand.hbm [shape: f32[2,16], index: 3, kind: output, shape index: {}]
  %s4 = sld [smem:[#allocation0]]
  $region22: #{tpu_custom_call.1} parent=0
    _
  %s6 = ssub.s32 1, %s4
  %s7 = scalar_select 0, %s6, %s4
  $region1: #{tpu_custom_call.1} parent=0
    #allocation2 [shape = 'u8[1024]{0}', space=vmem, size = 0x400, scoped, tag = 'output window, operand 0, single buffered']
    #allocation3 [shape = 's32[1]{0}', space=sflag, size = 0x4, scoped, tag = 'scoped memory for tpu_custom_call.1']
    %8 = vsyncpa [#allocation3], 0
    // Predicated region
    $region2: #{tpu_custom_call.1} parent=1 // pred_check
      _
    $region3: #{tpu_custom_call.1} parent=1 // pred_check_branch
      %10 = sbr.rel (0) target = $region5
    $region4: #{tpu_custom_call.1} parent=1 // pred_region
      _
    $region5: #{tpu_custom_call.1} parent=1 // pred_fallthru
      _
    // Predicated region
    $region6: #{tpu_custom_call.1} parent=1 // pred_check
      _
    $region7: #{tpu_custom_call.1} parent=1 // pred_check_branch
      %12 = sbr.rel (0) target = $region9
    $region8: #{tpu_custom_call.1} parent=1 // pred_region
      _
    $region9: #{tpu_custom_call.1} parent=1 // pred_fallthru
      _
    // Predicated region
    $region10: #{tpu_custom_call.1} parent=1 // pred_check
      _
    $region11: #{tpu_custom_call.1} parent=1 // pred_check_branch
      %14 = sbr.rel (0) target = $region13
    $region12: #{tpu_custom_call.1} parent=1 // pred_region
      _
    $region13: #{tpu_custom_call.1} parent=1 // pred_fallthru
      _
    %v15 = vld [vmem:[%s0] sm:$0x3]
    %v16 = vld [vmem:[%s1] sm:$0xff]
    %v17 = vld [vmem:[%s1 + $0x8] sm:$0xff]
    %v18 = vld [vmem:[%s1 + $0x10] sm:$0xff]
    %v19 = vld [vmem:[%s1 + $0x18] sm:$0xff]
    %v20 = vld [vmem:[%s2] sm:$0x1]
    %v22 = vperm.slane %v20, 0
    %vm24 = vcmask 261120
    %v26 = vsel %vm24, %v15, 0
    %28 = vmatpush.msra.mxu0 0.0
    %29 = vmatpush.msra.mxu0 0.0
    %30 = vmatpush.msra.mxu0 0.0
    %31 = vmatpush.msra.mxu0 0.0
    %32 = vmatpush.msra.mxu0 0.0
    %33 = vmatpush.msra.mxu0 0.0
    %34 = vmatpush.msra.mxu0 0.0
    %35 = vmatpush.msra.mxu0 0.0
    %36 = vmatpush.msra.mxu0 0.0
    %37 = vmatpush.msra.mxu0 0.0
    %38 = vmatpush.msra.mxu0 0.0
    %39 = vmatpush.msra.mxu0 0.0
    %40 = vmatpush.msra.mxu0 %v19
    %41 = vmatpush.msra.mxu0 %v18
    %42 = vmatpush.msra.mxu0 %v17
    %43 = vmatpush.msra.mxu0 %v16
    %44 = vmatmul.f32.gmra.mxu0 %v26
    %v45 = vpop.f32.mrf.mxu0
    %v46 = vadd.f32 %v22, %v45
    %47 = vdwg.mxu0
    %vm48 = vcmask 123904
    %49 = vst.msk [vmem:[#allocation2] sm:$0x3] %vm48, %v46
    // Predicated region
    $region14: #{tpu_custom_call.1} parent=1 // pred_check
      _
    $region15: #{tpu_custom_call.1} parent=1 // pred_check_branch
      %51 = sbr.rel (0) target = $region17
    $region16: #{tpu_custom_call.1} parent=1 // pred_region
      %53 = vsyncadd [#allocation3], 0
      %s55 = sshll.u32 [#allocation2], 4
      %s56 = int_to_ptr.vmem [resolvable:$true] %s55
      %s57 = sshll.u32 %s3, 4
      %s58 = int_to_ptr.hbm [resolvable:$true] %s57
      %60 = dma.vmem_to_hbm [thread:$0]  %s56, 32, %s58, [#allocation3]
    $region17: #{tpu_custom_call.1} parent=1 // pred_fallthru
      _
    // Predicated region
    $region18: #{tpu_custom_call.1} parent=1 // pred_check
      _
    $region19: #{tpu_custom_call.1} parent=1 // pred_check_branch
      %62 = sbr.rel (0) target = $region21
    $region20: #{tpu_custom_call.1} parent=1 // pred_region
      %64 = dma.done [#allocation3], 32
    $region21: #{tpu_custom_call.1} parent=1 // pred_fallthru
      _
    %65 = vsyncpa [#allocation3], 1

</llo_original>
